<compile_context>
chip_gen: v7x
topology: tpu7x:2x2x1
jax: 0.10.0
libtpu: 0.0.40
codegen_flags: <defaults>
</compile_context>

<pallas_src>
import jax
import jax.numpy as jnp
from jax.experimental import pallas as pl
from jax.experimental.pallas import tpu as pltpu  # noqa: F401 (tuning hooks)

LANE = 128      # TPU vreg lane width (last dim)
SUBLANE = 8     # TPU vreg sublane count (second-to-last dim, f32)


def _round_up(n, m):
    return ((n + m - 1) // m) * m


def _make_fused_mlp_kernel(n_layers, compute_dtype):
    """Whole-MLP kernel: chained (matmul -> bias -> ReLU) per layer.

    refs = (x, w0, b0, w1, b1, ..., out).  Every tile is lane/sublane padded
    and resident in VMEM; intermediate activations live only in vregs/VMEM.
    """
    def kernel(*refs):
        x_ref, o_ref = refs[0], refs[-1]
        h = x_ref[...].astype(jnp.float32)
        for i in range(n_layers):
            w_ref = refs[1 + 2 * i]
            b_ref = refs[2 + 2 * i]
            # bf16 MXU matmul with f32 accumulation.
            y = jnp.dot(h.astype(compute_dtype), w_ref[...],
                        preferred_element_type=jnp.float32)
            # Bias add + ReLU in f32 on the VPU.
            h = jnp.maximum(y + b_ref[...], 0.0)
        o_ref[...] = h.astype(o_ref.dtype)
    return kernel


def init_classifier_params(key, input_size, layer_sizes, n_classes,
                           dtype=jnp.float32):
    """nn.Linear-style init. Returns [(w_t (in,out), b (1,out)), ...] in f32."""
    params = []
    in_dim = input_size
    for out_dim in list(layer_sizes) + [n_classes]:
        key, kw, kb = jax.random.split(key, 3)
        bound = 1.0 / float(in_dim) ** 0.5
        # PyTorch stores weight as (out, in); we keep the transposed (in, out).
        w_t = jax.random.uniform(kw, (in_dim, out_dim), dtype, -bound, bound)
        b = jax.random.uniform(kb, (1, out_dim), dtype, -bound, bound)
        params.append((w_t, b))
        in_dim = out_dim
    return params


def pack_params(params, compute_dtype=jnp.bfloat16):
    """Zero-pad every feature dim to 128 lanes; weights cast to bf16.

    Returns a flat tuple (w0, b0, w1, b1, ...) ready for the fused kernel.
    """
    flat = []
    for w_t, b in params:
        in_dim, out_dim = w_t.shape
        in_p, out_p = _round_up(in_dim, LANE), _round_up(out_dim, LANE)
        w_pad = jnp.pad(w_t.astype(compute_dtype),
                        ((0, in_p - in_dim), (0, out_p - out_dim)))
        b_pad = jnp.pad(b.astype(jnp.float32), ((0, 0), (0, out_p - out_dim)))
        flat += [w_pad, b_pad]
    return tuple(flat)


def make_classifier_forward(input_size, layer_sizes, n_classes,
                            compute_dtype=jnp.bfloat16):
    """Builds a jitted forward: x (B, input_size) -> logits (B, n_classes)."""
    n_layers = len(list(layer_sizes)) + 1
    in_p0 = _round_up(input_size, LANE)
    out_pf = _round_up(n_classes, LANE)
    kernel = _make_fused_mlp_kernel(n_layers, compute_dtype)

    def forward(x, packed_flat):
        B = x.shape[0]
        B_pad = _round_up(max(B, SUBLANE), SUBLANE)
        x_pad = jnp.pad(x.astype(jnp.float32),
                        ((0, B_pad - B), (0, in_p0 - input_size)))
        out_pad = pl.pallas_call(
            kernel,
            out_shape=jax.ShapeDtypeStruct((B_pad, out_pf), jnp.float32),
        )(x_pad, *packed_flat)
        return out_pad[:B, :n_classes].astype(x.dtype)

    return jax.jit(forward)


if __name__ == "__main__":
    # Small shapes consistent with the module's MLP forward.
    batch = 8
    input_size = 32
    layer_sizes = [64, 32]
    n_classes = 16

    key = jax.random.PRNGKey(0)
    key_x, key_p = jax.random.split(key)

    x = jax.random.normal(key_x, (batch, input_size), jnp.float32)
    params = init_classifier_params(key_p, input_size, layer_sizes, n_classes)

    packed = pack_params(params, compute_dtype=jnp.bfloat16)
    fwd = make_classifier_forward(input_size, layer_sizes, n_classes,
                                  compute_dtype=jnp.bfloat16)

    out = jax.block_until_ready(fwd(x, packed))

    # Pure-JAX reference of the identical math (bf16 matmul, f32 accumulate,
    # f32 bias + ReLU) for correctness.
    ref = x
    for w_t, b in params:
        y = jnp.dot(ref.astype(jnp.bfloat16), w_t.astype(jnp.bfloat16),
                    preferred_element_type=jnp.float32)
        ref = jnp.maximum(y + b, 0.0)

    assert out.shape == (batch, n_classes)
    assert jnp.allclose(out, ref, atol=2e-2, rtol=2e-2), \
        float(jnp.max(jnp.abs(out - ref)))

    # TODO(synk): nn.Dropout (dropout != None, training mode) not implemented;
    # the reference module is used with dropout=None here (eval-equivalent).
    print("KERNEL_OK")
</pallas_src>

<mosaic_0001>
module attributes {stable_mosaic.version = 11 : i64} {
  func.func @kernel(%arg0: memref<8x128xf32, #tpu.memory_space<vmem>>, %arg1: memref<128x128xbf16, #tpu.memory_space<vmem>>, %arg2: memref<1x128xf32, #tpu.memory_space<vmem>>, %arg3: memref<128x128xbf16, #tpu.memory_space<vmem>>, %arg4: memref<1x128xf32, #tpu.memory_space<vmem>>, %arg5: memref<128x128xbf16, #tpu.memory_space<vmem>>, %arg6: memref<1x128xf32, #tpu.memory_space<vmem>>, %arg7: memref<8x128xf32, #tpu.memory_space<vmem>>) attributes {dimension_semantics = [], scalar_prefetch = 0 : i64, scratch_operands = 0 : i64, tpu.core_type = #tpu.core_type<tc>} {
    %c0 = arith.constant 0 : index
    %c0_0 = arith.constant 0 : index
    %0 = vector.load %arg0[%c0, %c0_0] : memref<8x128xf32, #tpu.memory_space<vmem>>, vector<8x128xf32>
    %1 = arith.truncf %0 : vector<8x128xf32> to vector<8x128xbf16>
    %c0_1 = arith.constant 0 : index
    %c0_2 = arith.constant 0 : index
    %2 = vector.load %arg1[%c0_1, %c0_2] : memref<128x128xbf16, #tpu.memory_space<vmem>>, vector<128x128xbf16>
    %cst = arith.constant dense<0.000000e+00> : vector<8x128xf32>
    %3 = tpu.matmul %1, %2, %cst {dimension_numbers = #tpu.dot_dimension_numbers<[1], [0], [0], [1], [0, 0, 1, 1], [], []>} : vector<8x128xbf16>, vector<128x128xbf16>, vector<8x128xf32> -> vector<8x128xf32>
    %c0_3 = arith.constant 0 : index
    %c0_4 = arith.constant 0 : index
    %4 = vector.load %arg2[%c0_3, %c0_4] : memref<1x128xf32, #tpu.memory_space<vmem>>, vector<1x128xf32>
    %5 = vector.broadcast %4 : vector<1x128xf32> to vector<8x128xf32>
    %6 = arith.addf %3, %5 : vector<8x128xf32>
    %cst_5 = arith.constant 0.000000e+00 : f32
    %7 = vector.broadcast %cst_5 : f32 to vector<8x128xf32>
    %8 = arith.maximumf %6, %7 : vector<8x128xf32>
    %9 = arith.truncf %8 : vector<8x128xf32> to vector<8x128xbf16>
    %c0_6 = arith.constant 0 : index
    %c0_7 = arith.constant 0 : index
    %10 = vector.load %arg3[%c0_6, %c0_7] : memref<128x128xbf16, #tpu.memory_space<vmem>>, vector<128x128xbf16>
    %cst_8 = arith.constant dense<0.000000e+00> : vector<8x128xf32>
    %11 = tpu.matmul %9, %10, %cst_8 {dimension_numbers = #tpu.dot_dimension_numbers<[1], [0], [0], [1], [0, 0, 1, 1], [], []>} : vector<8x128xbf16>, vector<128x128xbf16>, vector<8x128xf32> -> vector<8x128xf32>
    %c0_9 = arith.constant 0 : index
    %c0_10 = arith.constant 0 : index
    %12 = vector.load %arg4[%c0_9, %c0_10] : memref<1x128xf32, #tpu.memory_space<vmem>>, vector<1x128xf32>
    %13 = vector.broadcast %12 : vector<1x128xf32> to vector<8x128xf32>
    %14 = arith.addf %11, %13 : vector<8x128xf32>
    %cst_11 = arith.constant 0.000000e+00 : f32
    %15 = vector.broadcast %cst_11 : f32 to vector<8x128xf32>
    %16 = arith.maximumf %14, %15 : vector<8x128xf32>
    %17 = arith.truncf %16 : vector<8x128xf32> to vector<8x128xbf16>
    %c0_12 = arith.constant 0 : index
    %c0_13 = arith.constant 0 : index
    %18 = vector.load %arg5[%c0_12, %c0_13] : memref<128x128xbf16, #tpu.memory_space<vmem>>, vector<128x128xbf16>
    %cst_14 = arith.constant dense<0.000000e+00> : vector<8x128xf32>
    %19 = tpu.matmul %17, %18, %cst_14 {dimension_numbers = #tpu.dot_dimension_numbers<[1], [0], [0], [1], [0, 0, 1, 1], [], []>} : vector<8x128xbf16>, vector<128x128xbf16>, vector<8x128xf32> -> vector<8x128xf32>
    %c0_15 = arith.constant 0 : index
    %c0_16 = arith.constant 0 : index
    %20 = vector.load %arg6[%c0_15, %c0_16] : memref<1x128xf32, #tpu.memory_space<vmem>>, vector<1x128xf32>
    %21 = vector.broadcast %20 : vector<1x128xf32> to vector<8x128xf32>
    %22 = arith.addf %19, %21 : vector<8x128xf32>
    %cst_17 = arith.constant 0.000000e+00 : f32
    %23 = vector.broadcast %cst_17 : f32 to vector<8x128xf32>
    %24 = arith.maximumf %22, %23 : vector<8x128xf32>
    %c0_18 = arith.constant 0 : index
    %c0_19 = arith.constant 0 : index
    %25 = vector.load %arg7[%c0_18, %c0_19] : memref<8x128xf32, #tpu.memory_space<vmem>>, vector<8x128xf32>
    tpu.vector_store %arg7[%c0_18, %c0_19], %24 {strides = array<i32>} : memref<8x128xf32, #tpu.memory_space<vmem>>, vector<8x128xf32>,
    return
  }
}

</mosaic_0001>

<llo_original>
// kernel: forward.1
$region0: #{forward.1}
  #allocation0 [shape = 'u32[]', space=smem, size = 0x4, offset = 0x4, fixed_abs, tag = 'smem constant byte address 0x4 - core index']
  #allocation1 [shape = 'u32[144,128]{1,0:T(1,128)}', space=vmem, size = 0x12000, scoped, tag = 'internal scratch']
  %s0 = inlined_call_operand.vmem [shape: f32[8,128], index: 0, kind: input, shape index: {}]
  %s1 = inlined_call_operand.hbm [shape: bf16[128,128], index: 1, kind: input, shape index: {}]
  %s2 = inlined_call_operand.vmem [shape: f32[1,128], index: 2, kind: input, shape index: {}]
  %s3 = inlined_call_operand.hbm [shape: bf16[128,128], index: 3, kind: input, shape index: {}]
  %s4 = inlined_call_operand.vmem [shape: f32[1,128], index: 4, kind: input, shape index: {}]
  %s5 = inlined_call_operand.hbm [shape: bf16[128,128], index: 5, kind: input, shape index: {}]
  %s6 = inlined_call_operand.vmem [shape: f32[1,128], index: 6, kind: input, shape index: {}]
  %s7 = inlined_call_operand.hbm [shape: f32[8,128], index: 7, kind: output, shape index: {}]
  %s8 = sld [smem:[#allocation0]]
  $region50: #{forward.1} parent=0
    _
  %s10 = ssub.s32 1, %s8
  %s11 = scalar_select 0, %s10, %s8
  $region1: #{forward.1} parent=0
    #allocation2 [shape = 'u8[32768]{0}', space=vmem, size = 0x8000, scoped, tag = 'input window, operand 1, single buffered']
    #allocation3 [shape = 's32[1]{0}', space=sflag, size = 0x4, scoped, tag = 'scoped memory for forward.1']
    #allocation4 [shape = 's32[1]{0}', space=sflag, size = 0x4, scoped, tag = 'scoped memory for forward.1']
    #allocation5 [shape = 'u8[32768]{0}', space=vmem, size = 0x8000, scoped, tag = 'input window, operand 3, single buffered']
    #allocation6 [shape = 's32[1]{0}', space=sflag, size = 0x4, scoped, tag = 'scoped memory for forward.1']
    #allocation7 [shape = 'u8[32768]{0}', space=vmem, size = 0x8000, scoped, tag = 'input window, operand 5, single buffered']
    #allocation8 [shape = 'u8[4096]{0}', space=vmem, size = 0x1000, scoped, tag = 'output window, operand 0, single buffered']
    %12 = vsyncpa [#allocation3], 0
    %13 = vsyncpa [#allocation6], 0
    %14 = vsyncpa [#allocation4], 0
    // Predicated region
    $region2: #{forward.1} parent=1 // pred_check
      _
    $region3: #{forward.1} parent=1 // pred_check_branch
      %16 = sbr.rel (0) target = $region5
    $region4: #{forward.1} parent=1 // pred_region
      _
    $region5: #{forward.1} parent=1 // pred_fallthru
      _
    // Predicated region
    $region6: #{forward.1} parent=1 // pred_check
      _
    $region7: #{forward.1} parent=1 // pred_check_branch
      %18 = sbr.rel (0) target = $region9
    $region8: #{forward.1} parent=1 // pred_region
      %s20 = ssub.s32 1024, 1024
      %21 = vsyncadd [#allocation3], %s20
      %s22 = sshll.u32 [#allocation2], 4
      %s23 = int_to_ptr.vmem [resolvable:$true] %s22
      %28 = dma.hbm_to_vmem [thread:$0]  %s1, 1024, %s23, [#allocation3], 64, 64, 4
    $region9: #{forward.1} parent=1 // pred_fallthru
      _
    // Predicated region
    $region10: #{forward.1} parent=1 // pred_check
      _
    $region11: #{forward.1} parent=1 // pred_check_branch
      %30 = sbr.rel (0) target = $region13
    $region12: #{forward.1} parent=1 // pred_region
      _
    $region13: #{forward.1} parent=1 // pred_fallthru
      _
    // Predicated region
    $region14: #{forward.1} parent=1 // pred_check
      _
    $region15: #{forward.1} parent=1 // pred_check_branch
      %32 = sbr.rel (0) target = $region17
    $region16: #{forward.1} parent=1 // pred_region
      %s34 = ssub.s32 1024, 1024
      %35 = vsyncadd [#allocation6], %s34
      %s36 = sshll.u32 [#allocation5], 4
      %s37 = int_to_ptr.vmem [resolvable:$true] %s36
      %42 = dma.hbm_to_vmem [thread:$0]  %s3, 1024, %s37, [#allocation6], 64, 64, 4
    $region17: #{forward.1} parent=1 // pred_fallthru
      _
    // Predicated region
    $region18: #{forward.1} parent=1 // pred_check
      _
    $region19: #{forward.1} parent=1 // pred_check_branch
      %44 = sbr.rel (0) target = $region21
    $region20: #{forward.1} parent=1 // pred_region
      _
    $region21: #{forward.1} parent=1 // pred_fallthru
      _
    // Predicated region
    $region22: #{forward.1} parent=1 // pred_check
      _
    $region23: #{forward.1} parent=1 // pred_check_branch
      %46 = sbr.rel (0) target = $region25
    $region24: #{forward.1} parent=1 // pred_region
      %s48 = ssub.s32 1024, 1024
      %49 = vsyncadd [#allocation6], %s48
      %s50 = sshll.u32 [#allocation7], 4
      %s51 = int_to_ptr.vmem [resolvable:$true] %s50
      %56 = dma.hbm_to_vmem [thread:$0]  %s5, 1024, %s51, [#allocation6], 64, 64, 4
    $region25: #{forward.1} parent=1 // pred_fallthru
      _
    // Predicated region
    $region26: #{forward.1} parent=1 // pred_check
      _
    $region27: #{forward.1} parent=1 // pred_check_branch
      %58 = sbr.rel (0) target = $region29
    $region28: #{forward.1} parent=1 // pred_region
      _
    $region29: #{forward.1} parent=1 // pred_fallthru
      _
    // Predicated region
    $region30: #{forward.1} parent=1 // pred_check
      _
    $region31: #{forward.1} parent=1 // pred_check_branch
      %60 = sbr.rel (0) target = $region33
    $region32: #{forward.1} parent=1 // pred_region
      %61 = dma.done [#allocation3], 1024
    $region33: #{forward.1} parent=1 // pred_fallthru
      _
    // Predicated region
    $region34: #{forward.1} parent=1 // pred_check
      _
    $region35: #{forward.1} parent=1 // pred_check_branch
      %63 = sbr.rel (0) target = $region37
    $region36: #{forward.1} parent=1 // pred_region
      %64 = dma.done [#allocation6], 1024
    $region37: #{forward.1} parent=1 // pred_fallthru
      _
    // Predicated region
    $region38: #{forward.1} parent=1 // pred_check
      _
    $region39: #{forward.1} parent=1 // pred_check_branch
      %66 = sbr.rel (0) target = $region41
    $region40: #{forward.1} parent=1 // pred_region
      %67 = dma.done [#allocation6], 1024
    $region41: #{forward.1} parent=1 // pred_fallthru
      _
    %v69 = vld [vmem:[%s0] sm:$0xff]
    %v70 = vpack.c.bf16 %v69, %v69
    %v71 = vld [vmem:[#allocation2] sm:$0xf]
    %v72 = vld [vmem:[#allocation2 + $0x4] sm:$0xf]
    %v73 = vld [vmem:[#allocation2 + $0x8] sm:$0xf]
    %v74 = vld [vmem:[#allocation2 + $0xc] sm:$0xf]
    %v75 = vld [vmem:[#allocation2 + $0x10] sm:$0xf]
    %v76 = vld [vmem:[#allocation2 + $0x14] sm:$0xf]
    %v77 = vld [vmem:[#allocation2 + $0x18] sm:$0xf]
    %v78 = vld [vmem:[#allocation2 + $0x1c] sm:$0xf]
    %v79 = vld [vmem:[#allocation2 + $0x20] sm:$0xf]
    %v80 = vld [vmem:[#allocation2 + $0x24] sm:$0xf]
    %v81 = vld [vmem:[#allocation2 + $0x28] sm:$0xf]
    %v82 = vld [vmem:[#allocation2 + $0x2c] sm:$0xf]
    %v83 = vld [vmem:[#allocation2 + $0x30] sm:$0xf]
    %v84 = vld [vmem:[#allocation2 + $0x34] sm:$0xf]
    %v85 = vld [vmem:[#allocation2 + $0x38] sm:$0xf]
    %v86 = vld [vmem:[#allocation2 + $0x3c] sm:$0xf]
    %v87 = vld [vmem:[%s2] sm:$0x1]
    %v89 = vlaneseq
    %v90 = vshrl.u32 %v89, 7
    %v91 = vsub.s32 0, %v90
    %v92 = vrot.slane %v87, %v91
    %v110 = vunpack.c.l.b16 %v71
    %v111 = vunpack.c.l.b16 %v72
    %v112 = vunpack.c.l.b16 %v73
    %v113 = vunpack.c.l.b16 %v74
    %v114 = vunpack.c.l.b16 %v75
    %v115 = vunpack.c.l.b16 %v76
    %v116 = vunpack.c.l.b16 %v77
    %v117 = vunpack.c.l.b16 %v78
    %v118 = vunpack.c.l.b16 %v79
    %v119 = vunpack.c.l.b16 %v80
    %v120 = vunpack.c.l.b16 %v81
    %v121 = vunpack.c.l.b16 %v82
    %v122 = vunpack.c.l.b16 %v83
    %v123 = vunpack.c.l.b16 %v84
    %v124 = vunpack.c.l.b16 %v85
    %v125 = vunpack.c.l.b16 %v86
    %v126 = vpack.c.b16 %v111, %v110
    %v127 = vpack.c.b16 %v113, %v112
    %v128 = vpack.c.b16 %v115, %v114
    %v129 = vpack.c.b16 %v117, %v116
    %v130 = vpack.c.b16 %v119, %v118
    %v131 = vpack.c.b16 %v121, %v120
    %v132 = vpack.c.b16 %v123, %v122
    %v133 = vpack.c.b16 %v125, %v124
    %142 = vmatprep.subr.bf16.mxu0 0
    %143 = vmatpush1.bf16.msra.mxu0 %v126
    %144 = vmatprep.subr.bf16.mxu0 0
    %145 = vmatpush1.bf16.msra.mxu0 %v127
    %146 = vmatprep.subr.bf16.mxu0 0
    %147 = vmatpush1.bf16.msra.mxu0 %v128
    %148 = vmatprep.subr.bf16.mxu0 0
    %149 = vmatpush1.bf16.msra.mxu0 %v129
    %150 = vmatprep.subr.bf16.mxu0 0
    %151 = vmatpush1.bf16.msra.mxu0 %v130
    %152 = vmatprep.subr.bf16.mxu0 0
    %153 = vmatpush1.bf16.msra.mxu0 %v131
    %154 = vmatprep.subr.bf16.mxu0 0
    %155 = vmatpush1.bf16.msra.mxu0 %v132
    %156 = vmatprep.subr.bf16.mxu0 0
    %157 = vmatpush1.bf16.msra.mxu0 %v133
    %158 = vmatprep.subr.bf16.mxu0 0
    %159 = vmatpush1.bf16.msra.mxu0 0
    %160 = vmatprep.subr.bf16.mxu0 0
    %161 = vmatpush1.bf16.msra.mxu0 0
    %162 = vmatprep.subr.bf16.mxu0 0
    %163 = vmatpush1.bf16.msra.mxu0 0
    %164 = vmatprep.subr.bf16.mxu0 0
    %165 = vmatpush1.bf16.msra.mxu0 0
    %166 = vmatprep.subr.bf16.mxu0 0
    %167 = vmatpush1.bf16.msra.mxu0 0
    %168 = vmatprep.subr.bf16.mxu0 0
    %169 = vmatpush1.bf16.msra.mxu0 0
    %170 = vmatprep.subr.bf16.mxu0 0
    %171 = vmatpush1.bf16.msra.mxu0 0
    %172 = vmatprep.subr.bf16.mxu0 0
    %173 = vmatpush1.bf16.msra.mxu0 0
    %174 = vmatprep.mubr.bf16.mxu0 0
    %175 = vmatmul.mubr.bf16.gmra.mrb[0].mxu0 %v70
    %v176 = vpop.f32.mrb[0].mxu0
    %v177 = vadd.f32 %v92, %v176
    %v178 = vpop.f32.mrb[0].mxu0
    %v179 = vpop.f32.mrb[0].mxu0
    %v180 = vpop.f32.mrb[0].mxu0
    %181 = vdwg.mxu0
    %v182 = vmax.f32 %v177, 0.0
    %v183 = vpack.c.bf16 %v182, %v182
    %v184 = vld [vmem:[#allocation5] sm:$0xf]
    %v185 = vld [vmem:[#allocation5 + $0x4] sm:$0xf]
    %v186 = vld [vmem:[#allocation5 + $0x8] sm:$0xf]
    %v187 = vld [vmem:[#allocation5 + $0xc] sm:$0xf]
    %v188 = vld [vmem:[#allocation5 + $0x10] sm:$0xf]
    %v189 = vld [vmem:[#allocation5 + $0x14] sm:$0xf]
    %v190 = vld [vmem:[#allocation5 + $0x18] sm:$0xf]
    %v191 = vld [vmem:[#allocation5 + $0x1c] sm:$0xf]
    %v192 = vld [vmem:[#allocation5 + $0x20] sm:$0xf]
    %v193 = vld [vmem:[#allocation5 + $0x24] sm:$0xf]
    %v194 = vld [vmem:[#allocation5 + $0x28] sm:$0xf]
    %v195 = vld [vmem:[#allocation5 + $0x2c] sm:$0xf]
    %v196 = vld [vmem:[#allocation5 + $0x30] sm:$0xf]
    %v197 = vld [vmem:[#allocation5 + $0x34] sm:$0xf]
    %v198 = vld [vmem:[#allocation5 + $0x38] sm:$0xf]
    %v199 = vld [vmem:[#allocation5 + $0x3c] sm:$0xf]
    %v200 = vld [vmem:[%s4] sm:$0x1]
    %v202 = vlaneseq
    %v203 = vshrl.u32 %v202, 7
    %v204 = vsub.s32 0, %v203
    %v205 = vrot.slane %v200, %v204
    %v223 = vunpack.c.l.b16 %v184
    %v224 = vunpack.c.l.b16 %v185
    %v225 = vunpack.c.l.b16 %v186
    %v226 = vunpack.c.l.b16 %v187
    %v227 = vunpack.c.l.b16 %v188
    %v228 = vunpack.c.l.b16 %v189
    %v229 = vunpack.c.l.b16 %v190
    %v230 = vunpack.c.l.b16 %v191
    %v231 = vunpack.c.l.b16 %v192
    %v232 = vunpack.c.l.b16 %v193
    %v233 = vunpack.c.l.b16 %v194
    %v234 = vunpack.c.l.b16 %v195
    %v235 = vunpack.c.l.b16 %v196
    %v236 = vunpack.c.l.b16 %v197
    %v237 = vunpack.c.l.b16 %v198
    %v238 = vunpack.c.l.b16 %v199
    %v239 = vpack.c.b16 %v224, %v223
    %v240 = vpack.c.b16 %v226, %v225
    %v241 = vpack.c.b16 %v228, %v227
    %v242 = vpack.c.b16 %v230, %v229
    %v243 = vpack.c.b16 %v232, %v231
    %v244 = vpack.c.b16 %v234, %v233
    %v245 = vpack.c.b16 %v236, %v235
    %v246 = vpack.c.b16 %v238, %v237
    %255 = vmatprep.subr.bf16.mxu0 0
    %256 = vmatpush1.bf16.msra.mxu0 %v239
    %257 = vmatprep.subr.bf16.mxu0 0
    %258 = vmatpush1.bf16.msra.mxu0 %v240
    %259 = vmatprep.subr.bf16.mxu0 0
    %260 = vmatpush1.bf16.msra.mxu0 %v241
    %261 = vmatprep.subr.bf16.mxu0 0
    %262 = vmatpush1.bf16.msra.mxu0 %v242
    %263 = vmatprep.subr.bf16.mxu0 0
    %264 = vmatpush1.bf16.msra.mxu0 %v243
    %265 = vmatprep.subr.bf16.mxu0 0
    %266 = vmatpush1.bf16.msra.mxu0 %v244
    %267 = vmatprep.subr.bf16.mxu0 0
    %268 = vmatpush1.bf16.msra.mxu0 %v245
    %269 = vmatprep.subr.bf16.mxu0 0
    %270 = vmatpush1.bf16.msra.mxu0 %v246
    %271 = vmatprep.subr.bf16.mxu0 0
    %272 = vmatpush1.bf16.msra.mxu0 0
    %273 = vmatprep.subr.bf16.mxu0 0
    %274 = vmatpush1.bf16.msra.mxu0 0
    %275 = vmatprep.subr.bf16.mxu0 0
    %276 = vmatpush1.bf16.msra.mxu0 0
    %277 = vmatprep.subr.bf16.mxu0 0
    %278 = vmatpush1.bf16.msra.mxu0 0
    %279 = vmatprep.subr.bf16.mxu0 0
    %280 = vmatpush1.bf16.msra.mxu0 0
    %281 = vmatprep.subr.bf16.mxu0 0
    %282 = vmatpush1.bf16.msra.mxu0 0
    %283 = vmatprep.subr.bf16.mxu0 0
    %284 = vmatpush1.bf16.msra.mxu0 0
    %285 = vmatprep.subr.bf16.mxu0 0
    %286 = vmatpush1.bf16.msra.mxu0 0
    %287 = vmatprep.mubr.bf16.mxu0 0
    %288 = vmatmul.mubr.bf16.gmra.mrb[0].mxu0 %v183
    %v289 = vpop.f32.mrb[0].mxu0
    %v290 = vadd.f32 %v205, %v289
    %v291 = vpop.f32.mrb[0].mxu0
    %v292 = vpop.f32.mrb[0].mxu0
    %v293 = vpop.f32.mrb[0].mxu0
    %294 = vdwg.mxu0
    %v295 = vmax.f32 %v290, 0.0
    %v296 = vpack.c.bf16 %v295, %v295
    %v297 = vld [vmem:[#allocation7] sm:$0xf]
    %v298 = vld [vmem:[#allocation7 + $0x4] sm:$0xf]
    %v299 = vld [vmem:[#allocation7 + $0x8] sm:$0xf]
    %v300 = vld [vmem:[#allocation7 + $0xc] sm:$0xf]
    %v301 = vld [vmem:[#allocation7 + $0x10] sm:$0xf]
    %v302 = vld [vmem:[#allocation7 + $0x14] sm:$0xf]
    %v303 = vld [vmem:[#allocation7 + $0x18] sm:$0xf]
    %v304 = vld [vmem:[#allocation7 + $0x1c] sm:$0xf]
    %v305 = vld [vmem:[#allocation7 + $0x20] sm:$0xf]
    %v306 = vld [vmem:[#allocation7 + $0x24] sm:$0xf]
    %v307 = vld [vmem:[#allocation7 + $0x28] sm:$0xf]
    %v308 = vld [vmem:[#allocation7 + $0x2c] sm:$0xf]
    %v309 = vld [vmem:[#allocation7 + $0x30] sm:$0xf]
    %v310 = vld [vmem:[#allocation7 + $0x34] sm:$0xf]
    %v311 = vld [vmem:[#allocation7 + $0x38] sm:$0xf]
    %v312 = vld [vmem:[#allocation7 + $0x3c] sm:$0xf]
    %v313 = vld [vmem:[%s6] sm:$0x1]
    %v315 = vlaneseq
    %v316 = vshrl.u32 %v315, 7
    %v317 = vsub.s32 0, %v316
    %v318 = vrot.slane %v313, %v317
    %v336 = vunpack.c.l.b16 %v297
    %v337 = vunpack.c.l.b16 %v298
    %v338 = vunpack.c.l.b16 %v299
    %v339 = vunpack.c.l.b16 %v300
    %v340 = vunpack.c.l.b16 %v301
    %v341 = vunpack.c.l.b16 %v302
    %v342 = vunpack.c.l.b16 %v303
    %v343 = vunpack.c.l.b16 %v304
    %v344 = vunpack.c.l.b16 %v305
    %v345 = vunpack.c.l.b16 %v306
    %v346 = vunpack.c.l.b16 %v307
    %v347 = vunpack.c.l.b16 %v308
    %v348 = vunpack.c.l.b16 %v309
    %v349 = vunpack.c.l.b16 %v310
    %v350 = vunpack.c.l.b16 %v311
    %v351 = vunpack.c.l.b16 %v312
    %v352 = vpack.c.b16 %v337, %v336
    %v353 = vpack.c.b16 %v339, %v338
    %v354 = vpack.c.b16 %v341, %v340
    %v355 = vpack.c.b16 %v343, %v342
    %v356 = vpack.c.b16 %v345, %v344
    %v357 = vpack.c.b16 %v347, %v346
    %v358 = vpack.c.b16 %v349, %v348
    %v359 = vpack.c.b16 %v351, %v350
    %368 = vmatprep.subr.bf16.mxu0 0
    %369 = vmatpush1.bf16.msra.mxu0 %v352
    %370 = vmatprep.subr.bf16.mxu0 0
    %371 = vmatpush1.bf16.msra.mxu0 %v353
    %372 = vmatprep.subr.bf16.mxu0 0
    %373 = vmatpush1.bf16.msra.mxu0 %v354
    %374 = vmatprep.subr.bf16.mxu0 0
    %375 = vmatpush1.bf16.msra.mxu0 %v355
    %376 = vmatprep.subr.bf16.mxu0 0
    %377 = vmatpush1.bf16.msra.mxu0 %v356
    %378 = vmatprep.subr.bf16.mxu0 0
    %379 = vmatpush1.bf16.msra.mxu0 %v357
    %380 = vmatprep.subr.bf16.mxu0 0
    %381 = vmatpush1.bf16.msra.mxu0 %v358
    %382 = vmatprep.subr.bf16.mxu0 0
    %383 = vmatpush1.bf16.msra.mxu0 %v359
    %384 = vmatprep.subr.bf16.mxu0 0
    %385 = vmatpush1.bf16.msra.mxu0 0
    %386 = vmatprep.subr.bf16.mxu0 0
    %387 = vmatpush1.bf16.msra.mxu0 0
    %388 = vmatprep.subr.bf16.mxu0 0
    %389 = vmatpush1.bf16.msra.mxu0 0
    %390 = vmatprep.subr.bf16.mxu0 0
    %391 = vmatpush1.bf16.msra.mxu0 0
    %392 = vmatprep.subr.bf16.mxu0 0
    %393 = vmatpush1.bf16.msra.mxu0 0
    %394 = vmatprep.subr.bf16.mxu0 0
    %395 = vmatpush1.bf16.msra.mxu0 0
    %396 = vmatprep.subr.bf16.mxu0 0
    %397 = vmatpush1.bf16.msra.mxu0 0
    %398 = vmatprep.subr.bf16.mxu0 0
    %399 = vmatpush1.bf16.msra.mxu0 0
    %400 = vmatprep.mubr.bf16.mxu0 0
    %401 = vmatmul.mubr.bf16.gmra.mrb[0].mxu0 %v296
    %v402 = vpop.f32.mrb[0].mxu0
    %v403 = vadd.f32 %v318, %v402
    %v404 = vpop.f32.mrb[0].mxu0
    %v405 = vpop.f32.mrb[0].mxu0
    %v406 = vpop.f32.mrb[0].mxu0
    %407 = vdwg.mxu0
    %v408 = vmax.f32 %v403, 0.0
    %409 = vst [vmem:[#allocation8] sm:$0xff] %v408
    // Predicated region
    $region42: #{forward.1} parent=1 // pred_check
      _
    $region43: #{forward.1} parent=1 // pred_check_branch
      %411 = sbr.rel (0) target = $region45
    $region44: #{forward.1} parent=1 // pred_region
      %s413 = ssub.s32 128, 128
      %414 = vsyncadd [#allocation4], %s413
      %s416 = sshll.u32 [#allocation8], 4
      %s417 = int_to_ptr.vmem [resolvable:$true] %s416
      %419 = dma.vmem_to_hbm [thread:$0]  %s417, 128, %s7, [#allocation4]
    $region45: #{forward.1} parent=1 // pred_fallthru
      _
    // Predicated region
    $region46: #{forward.1} parent=1 // pred_check
      _
    $region47: #{forward.1} parent=1 // pred_check_branch
      %421 = sbr.rel (0) target = $region49
    $region48: #{forward.1} parent=1 // pred_region
      %422 = dma.done [#allocation4], 128
    $region49: #{forward.1} parent=1 // pred_fallthru
      _
    %423 = vsyncpa [#allocation3], 1
    %424 = vsyncpa [#allocation6], 1
    %425 = vsyncpa [#allocation4], 1

</llo_original>
